<compile_context>
chip_gen: v7x
topology: tpu7x:2x2x1
jax: 0.10.0
libtpu: 0.0.40
codegen_flags: <defaults>
</compile_context>

<pallas_src>
import functools

import jax
import jax.numpy as jnp
from jax import lax
from jax.experimental import pallas as pl
from jax.experimental.pallas import tpu as pltpu

LOG_STD_MIN = -20.0
LOG_STD_MAX = 2.0


def _round_up(x, m):
    return ((x + m - 1) // m) * m


def _pick_tile_b(batch, tile_b):
    """Lane-axis (batch) tile: must be a multiple of 128 or the whole (padded)
    batch.  Prefer >=2 grid blocks so the 'parallel' axis splits across v7x
    TensorCores."""
    if batch <= 128:
        return batch, batch                      # single full-width block
    tile = max(128, (min(tile_b, batch) // 128) * 128)
    if _round_up(batch, tile) // tile < 2:       # force >=2 grid steps
        tile = max(128, (_round_up(batch, 256) // 2 // 128) * 128)
    return tile, _round_up(batch, tile)


def _gaussian_policy_kernel(s_ref, p_ref,
                            w1s_ref, w1p_ref, b1_ref,
                            w2_ref, b2_ref,
                            w3_ref, b3_ref,
                            out_ref):
    # Layer 1 (fused "concat"): W1[:, :S] @ s + W1[:, S:] @ p + b1, ReLU.
    h1 = jnp.dot(w1s_ref[...], s_ref[...], preferred_element_type=jnp.float32)
    h1 += jnp.dot(w1p_ref[...], p_ref[...], preferred_element_type=jnp.float32)
    h1 = jnp.maximum(h1 + b1_ref[...], 0.0)            # (H1, TILE_B), f32

    # Layer 2.
    h2 = jnp.dot(w2_ref[...], h1.astype(w2_ref.dtype),
                 preferred_element_type=jnp.float32) + b2_ref[...]
    h2 = jnp.maximum(h2, 0.0)                           # (H2, TILE_B), f32

    # Layer 3: fused mean/log_std head -> (2A, TILE_B), lane-dense store.
    out = jnp.dot(w3_ref[...], h2.astype(w3_ref.dtype),
                  preferred_element_type=jnp.float32) + b3_ref[...]
    two_a = out_ref.shape[0]
    a = two_a // 2
    row = lax.broadcasted_iota(jnp.int32, out.shape, 0)    # sublane index
    out = jnp.where(row >= a, jnp.clip(out, LOG_STD_MIN, LOG_STD_MAX), out)
    out_ref[...] = out.astype(out_ref.dtype)


def prepare_params(params, state_dim, compute_dtype=jnp.bfloat16):
    """One-time conversion to kernel layout (feature-major, bf16 weights)."""
    w1, b1, w2, b2, w3, b3 = params            # w: (in, out), b: (1, out)
    w1_t = jnp.asarray(w1).T                   # (H1, D)
    return (
        w1_t[:, :state_dim].astype(compute_dtype),    # W1 states half: (H1, S)
        w1_t[:, state_dim:].astype(compute_dtype),    # W1 pref half  : (H1, P)
        jnp.asarray(b1).T.astype(jnp.float32),        # (H1, 1)
        jnp.asarray(w2).T.astype(compute_dtype),      # (H2, H1)
        jnp.asarray(b2).T.astype(jnp.float32),        # (H2, 1)
        jnp.asarray(w3).T.astype(compute_dtype),      # (2A, H2) fused head
        jnp.asarray(b3).T.astype(jnp.float32),        # (2A, 1)
    )


@functools.partial(jax.jit, static_argnames=("tile_b",))
def gaussian_policy_forward(states, preference, kparams, tile_b=1024):
    """Returns (mean, log_std) matching GaussianPolicy.forward semantics.

    `kparams` is the tuple returned by `prepare_params`.  `tile_b` can be swept
    (1024-4096); per-tile VMEM in the transposed bf16 form is a few hundred KiB.
    """
    B, S = states.shape
    _, P = preference.shape
    w1s, w1p, b1, w2, b2, w3, b3 = kparams
    H1 = w1s.shape[0]
    H2 = w2.shape[0]
    A2 = w3.shape[0]
    A = A2 // 2
    cdt = w1s.dtype

    TILE_B, B_pad = _pick_tile_b(B, int(tile_b))

    # Feature-major inputs (batch on lanes); XLA fuses transpose+cast+pad into
    # one cheap relayout outside the kernel.  Callers that already hold
    # feature-major activations can skip this entirely.
    s_t = states.astype(cdt).T
    p_t = preference.astype(cdt).T
    if B_pad != B:
        pad = B_pad - B
        s_t = jnp.pad(s_t, ((0, 0), (0, pad)))
        p_t = jnp.pad(p_t, ((0, 0), (0, pad)))

    grid = (B_pad // TILE_B,)

    # Activations / output tiled along the (lane) batch axis; weights & biases
    # stay resident in VMEM (same (0, 0) block every grid step).
    act_spec = lambda feat: pl.BlockSpec((feat, TILE_B), lambda i: (0, i))
    res_spec = lambda shape: pl.BlockSpec(shape, lambda i: (0, 0))

    D = S + P
    itemsize = jnp.dtype(cdt).itemsize
    flops = 2 * B_pad * (D * H1 + H1 * H2 + H2 * A2)
    bytes_accessed = (
        itemsize * (B_pad * D + D * H1 + H1 * H2 + H2 * A2)   # acts in + weights
        + 4 * (H1 + H2 + A2)                                  # biases (f32)
        + 4 * B_pad * A2                                      # output (f32)
    )

    out_t = pl.pallas_call(
        _gaussian_policy_kernel,
        out_shape=jax.ShapeDtypeStruct((A2, B_pad), jnp.float32),
        grid=grid,
        in_specs=[
            act_spec(S), act_spec(P),
            res_spec((H1, S)), res_spec((H1, P)), res_spec((H1, 1)),
            res_spec((H2, H1)), res_spec((H2, 1)),
            res_spec((A2, H2)), res_spec((A2, 1)),
        ],
        out_specs=act_spec(A2),
        compiler_params=pltpu.CompilerParams(
            dimension_semantics=("parallel",),   # megacore split on v7x
        ),
        cost_estimate=pl.CostEstimate(
            flops=flops, transcendentals=0, bytes_accessed=bytes_accessed),
    )(s_t, p_t, w1s, w1p, b1, w2, b2, w3, b3)

    # Split fused head and return batch-major results (layout plumbing in XLA).
    mean = out_t[:A, :B].T
    log_std = out_t[A:, :B].T
    return mean, log_std


def init_params(key, num_inputs, num_actions, hidden_units=(32, 32)):
    """Deterministic Xavier-uniform init (matches initializer='xavier')."""
    dims = [num_inputs, hidden_units[0], hidden_units[1], num_actions * 2]
    params = []
    for i in range(3):
        key, kw = jax.random.split(key)
        fan_in, fan_out = dims[i], dims[i + 1]
        limit = (6.0 / (fan_in + fan_out)) ** 0.5
        w = jax.random.uniform(kw, (fan_in, fan_out), jnp.float32, -limit, limit)
        b = jnp.zeros((1, fan_out), jnp.float32)
        params += [w, b]
    return tuple(params)


def reference_forward(states, preference, params, compute_dtype=jnp.float32):
    """Pure-JAX reference.  compute_dtype=bf16 mirrors the kernel's MXU
    operand precision (f32 accumulation in both)."""
    x = jnp.concatenate([states, preference], axis=1)
    w1, b1, w2, b2, w3, b3 = params

    def mm(a, w):
        return jnp.dot(a.astype(compute_dtype), w.astype(compute_dtype),
                       preferred_element_type=jnp.float32)

    h1 = jnp.maximum(mm(x, w1) + b1, 0.0)
    h2 = jnp.maximum(mm(h1, w2) + b2, 0.0)
    out = mm(h2, w3) + b3
    A = w3.shape[1] // 2
    return out[:, :A], jnp.clip(out[:, A:], LOG_STD_MIN, LOG_STD_MAX)


if __name__ == "__main__":
    key = jax.random.PRNGKey(0)
    k_s, k_p, k_w = jax.random.split(key, 3)

    batch = 8
    state_dim = 12
    pref_dim = 4
    num_actions = 4
    num_inputs = state_dim + pref_dim      # states + preference concatenated

    states = jax.random.normal(k_s, (batch, state_dim), jnp.float32)
    preference = jax.random.normal(k_p, (batch, pref_dim), jnp.float32)
    params = init_params(k_w, num_inputs, num_actions, hidden_units=(32, 32))
    kparams = prepare_params(params, state_dim)          # bf16 weights, f32 biases

    mean, log_std = gaussian_policy_forward(states, preference, kparams)
    jax.block_until_ready((mean, log_std))

    assert mean.shape == (batch, num_actions)
    assert log_std.shape == (batch, num_actions)

    # Matched-precision check: reference uses the same bf16 operands / f32 acc.
    ref_mean, ref_log_std = reference_forward(states, preference, params,
                                              compute_dtype=jnp.bfloat16)
    assert jnp.allclose(mean, ref_mean, atol=5e-3, rtol=5e-3)
    assert jnp.allclose(log_std, ref_log_std, atol=5e-3, rtol=5e-3)

    # Loose sanity check against the full-f32 reference (bf16 matmul error).
    f32_mean, f32_log_std = reference_forward(states, preference, params)
    assert jnp.allclose(mean, f32_mean, atol=1e-1, rtol=1e-1)
    assert jnp.allclose(log_std, f32_log_std, atol=1e-1, rtol=1e-1)

    assert bool(jnp.all(log_std <= LOG_STD_MAX))
    assert bool(jnp.all(log_std >= LOG_STD_MIN))

    print("KERNEL_OK")
</pallas_src>

<mosaic_0001>
module attributes {stable_mosaic.version = 11 : i64} {
  func.func @_gaussian_policy_kernel(%arg0: i32, %arg1: memref<12x8xbf16, #tpu.memory_space<vmem>>, %arg2: memref<4x8xbf16, #tpu.memory_space<vmem>>, %arg3: memref<32x12xbf16, #tpu.memory_space<vmem>>, %arg4: memref<32x4xbf16, #tpu.memory_space<vmem>>, %arg5: memref<32x1xf32, #tpu.memory_space<vmem>>, %arg6: memref<32x32xbf16, #tpu.memory_space<vmem>>, %arg7: memref<32x1xf32, #tpu.memory_space<vmem>>, %arg8: memref<8x32xbf16, #tpu.memory_space<vmem>>, %arg9: memref<8x1xf32, #tpu.memory_space<vmem>>, %arg10: memref<8x8xf32, #tpu.memory_space<vmem>>) attributes {dimension_semantics = [#tpu.dimension_semantics<parallel>], iteration_bounds = array<i64: 1>, scalar_prefetch = 0 : i64, scratch_operands = 0 : i64, tpu.core_type = #tpu.core_type<tc>, window_params = [{transform_indices = @transform_0, window_bounds = array<i64: 12, 8>}, {transform_indices = @transform_1, window_bounds = array<i64: 4, 8>}, {pipeline_mode = #tpu.pipeline_mode<synchronous>, transform_indices = @transform_2, window_bounds = array<i64: 32, 12>}, {pipeline_mode = #tpu.pipeline_mode<synchronous>, transform_indices = @transform_3, window_bounds = array<i64: 32, 4>}, {pipeline_mode = #tpu.pipeline_mode<synchronous>, transform_indices = @transform_4, window_bounds = array<i64: 32, 1>}, {pipeline_mode = #tpu.pipeline_mode<synchronous>, transform_indices = @transform_5, window_bounds = array<i64: 32, 32>}, {pipeline_mode = #tpu.pipeline_mode<synchronous>, transform_indices = @transform_6, window_bounds = array<i64: 32, 1>}, {pipeline_mode = #tpu.pipeline_mode<synchronous>, transform_indices = @transform_7, window_bounds = array<i64: 8, 32>}, {pipeline_mode = #tpu.pipeline_mode<synchronous>, transform_indices = @transform_8, window_bounds = array<i64: 8, 1>}, {transform_indices = @transform_9, window_bounds = array<i64: 8, 8>}]} {
    %c0 = arith.constant 0 : index
    %c0_0 = arith.constant 0 : index
    %0 = vector.load %arg3[%c0, %c0_0] : memref<32x12xbf16, #tpu.memory_space<vmem>>, vector<32x12xbf16>
    %c0_1 = arith.constant 0 : index
    %c0_2 = arith.constant 0 : index
    %1 = vector.load %arg1[%c0_1, %c0_2] : memref<12x8xbf16, #tpu.memory_space<vmem>>, vector<12x8xbf16>
    %cst = arith.constant dense<0.000000e+00> : vector<32x8xf32>
    %2 = tpu.matmul %0, %1, %cst {dimension_numbers = #tpu.dot_dimension_numbers<[1], [0], [0], [1], [0, 0, 1, 1], [], []>} : vector<32x12xbf16>, vector<12x8xbf16>, vector<32x8xf32> -> vector<32x8xf32>
    %c0_3 = arith.constant 0 : index
    %c0_4 = arith.constant 0 : index
    %3 = vector.load %arg4[%c0_3, %c0_4] : memref<32x4xbf16, #tpu.memory_space<vmem>>, vector<32x4xbf16>
    %c0_5 = arith.constant 0 : index
    %c0_6 = arith.constant 0 : index
    %4 = vector.load %arg2[%c0_5, %c0_6] : memref<4x8xbf16, #tpu.memory_space<vmem>>, vector<4x8xbf16>
    %cst_7 = arith.constant dense<0.000000e+00> : vector<32x8xf32>
    %5 = tpu.matmul %3, %4, %cst_7 {dimension_numbers = #tpu.dot_dimension_numbers<[1], [0], [0], [1], [0, 0, 1, 1], [], []>} : vector<32x4xbf16>, vector<4x8xbf16>, vector<32x8xf32> -> vector<32x8xf32>
    %6 = arith.addf %2, %5 : vector<32x8xf32>
    %c0_8 = arith.constant 0 : index
    %c0_9 = arith.constant 0 : index
    %7 = vector.load %arg5[%c0_8, %c0_9] : memref<32x1xf32, #tpu.memory_space<vmem>>, vector<32x1xf32>
    %8 = vector.broadcast %7 : vector<32x1xf32> to vector<32x8xf32>
    %9 = arith.addf %6, %8 : vector<32x8xf32>
    %cst_10 = arith.constant 0.000000e+00 : f32
    %10 = vector.broadcast %cst_10 : f32 to vector<32x8xf32>
    %11 = arith.maximumf %9, %10 : vector<32x8xf32>
    %c0_11 = arith.constant 0 : index
    %c0_12 = arith.constant 0 : index
    %12 = vector.load %arg6[%c0_11, %c0_12] : memref<32x32xbf16, #tpu.memory_space<vmem>>, vector<32x32xbf16>
    %13 = arith.truncf %11 : vector<32x8xf32> to vector<32x8xbf16>
    %cst_13 = arith.constant dense<0.000000e+00> : vector<32x8xf32>
    %14 = tpu.matmul %12, %13, %cst_13 {dimension_numbers = #tpu.dot_dimension_numbers<[1], [0], [0], [1], [0, 0, 1, 1], [], []>} : vector<32x32xbf16>, vector<32x8xbf16>, vector<32x8xf32> -> vector<32x8xf32>
    %c0_14 = arith.constant 0 : index
    %c0_15 = arith.constant 0 : index
    %15 = vector.load %arg7[%c0_14, %c0_15] : memref<32x1xf32, #tpu.memory_space<vmem>>, vector<32x1xf32>
    %16 = vector.broadcast %15 : vector<32x1xf32> to vector<32x8xf32>
    %17 = arith.addf %14, %16 : vector<32x8xf32>
    %cst_16 = arith.constant 0.000000e+00 : f32
    %18 = vector.broadcast %cst_16 : f32 to vector<32x8xf32>
    %19 = arith.maximumf %17, %18 : vector<32x8xf32>
    %c0_17 = arith.constant 0 : index
    %c0_18 = arith.constant 0 : index
    %20 = vector.load %arg8[%c0_17, %c0_18] : memref<8x32xbf16, #tpu.memory_space<vmem>>, vector<8x32xbf16>
    %21 = arith.truncf %19 : vector<32x8xf32> to vector<32x8xbf16>
    %cst_19 = arith.constant dense<0.000000e+00> : vector<8x8xf32>
    %22 = tpu.matmul %20, %21, %cst_19 {dimension_numbers = #tpu.dot_dimension_numbers<[1], [0], [0], [1], [0, 0, 1, 1], [], []>} : vector<8x32xbf16>, vector<32x8xbf16>, vector<8x8xf32> -> vector<8x8xf32>
    %c0_20 = arith.constant 0 : index
    %c0_21 = arith.constant 0 : index
    %23 = vector.load %arg9[%c0_20, %c0_21] : memref<8x1xf32, #tpu.memory_space<vmem>>, vector<8x1xf32>
    %24 = vector.broadcast %23 : vector<8x1xf32> to vector<8x8xf32>
    %25 = arith.addf %22, %24 : vector<8x8xf32>
    %26 = tpu.iota {dimensions = array<i32: 0>} : vector<8x8xi32>
    %c4_i32 = arith.constant 4 : i32
    %27 = vector.broadcast %c4_i32 : i32 to vector<8x8xi32>
    %28 = arith.cmpi sge, %26, %27 : vector<8x8xi32>
    %cst_22 = arith.constant -2.000000e+01 : f32
    %cst_23 = arith.constant 2.000000e+00 : f32
    %29 = vector.broadcast %cst_22 : f32 to vector<8x8xf32>
    %30 = arith.maximumf %29, %25 : vector<8x8xf32>
    %31 = vector.broadcast %cst_23 : f32 to vector<8x8xf32>
    %32 = arith.minimumf %31, %30 : vector<8x8xf32>
    %33 = arith.select %28, %32, %25 : vector<8x8xi1>, vector<8x8xf32>
    %c0_24 = arith.constant 0 : index
    %c0_25 = arith.constant 0 : index
    %34 = vector.load %arg10[%c0_24, %c0_25] : memref<8x8xf32, #tpu.memory_space<vmem>>, vector<8x8xf32>
    tpu.vector_store %arg10[%c0_24, %c0_25], %33 {strides = array<i32>} : memref<8x8xf32, #tpu.memory_space<vmem>>, vector<8x8xf32>,
    return
  }
  func.func @transform_0(%arg0: i32) -> (i32, i32) {
    %c0_i32 = arith.constant 0 : i32
    %c0_i32_0 = arith.constant 0 : i32
    return %c0_i32, %arg0 : i32, i32
  }
  func.func @transform_1(%arg0: i32) -> (i32, i32) {
    %c0_i32 = arith.constant 0 : i32
    %c0_i32_0 = arith.constant 0 : i32
    return %c0_i32, %arg0 : i32, i32
  }
  func.func @transform_2(%arg0: i32) -> (i32, i32) {
    %c0_i32 = arith.constant 0 : i32
    %c0_i32_0 = arith.constant 0 : i32
    %c0_i32_1 = arith.constant 0 : i32
    return %c0_i32, %c0_i32_0 : i32, i32
  }
  func.func @transform_3(%arg0: i32) -> (i32, i32) {
    %c0_i32 = arith.constant 0 : i32
    %c0_i32_0 = arith.constant 0 : i32
    %c0_i32_1 = arith.constant 0 : i32
    return %c0_i32, %c0_i32_0 : i32, i32
  }
  func.func @transform_4(%arg0: i32) -> (i32, i32) {
    %c0_i32 = arith.constant 0 : i32
    %c0_i32_0 = arith.constant 0 : i32
    %c0_i32_1 = arith.constant 0 : i32
    return %c0_i32, %c0_i32_0 : i32, i32
  }
  func.func @transform_5(%arg0: i32) -> (i32, i32) {
    %c0_i32 = arith.constant 0 : i32
    %c0_i32_0 = arith.constant 0 : i32
    %c0_i32_1 = arith.constant 0 : i32
    return %c0_i32, %c0_i32_0 : i32, i32
  }
  func.func @transform_6(%arg0: i32) -> (i32, i32) {
    %c0_i32 = arith.constant 0 : i32
    %c0_i32_0 = arith.constant 0 : i32
    %c0_i32_1 = arith.constant 0 : i32
    return %c0_i32, %c0_i32_0 : i32, i32
  }
  func.func @transform_7(%arg0: i32) -> (i32, i32) {
    %c0_i32 = arith.constant 0 : i32
    %c0_i32_0 = arith.constant 0 : i32
    %c0_i32_1 = arith.constant 0 : i32
    return %c0_i32, %c0_i32_0 : i32, i32
  }
  func.func @transform_8(%arg0: i32) -> (i32, i32) {
    %c0_i32 = arith.constant 0 : i32
    %c0_i32_0 = arith.constant 0 : i32
    %c0_i32_1 = arith.constant 0 : i32
    return %c0_i32, %c0_i32_0 : i32, i32
  }
  func.func @transform_9(%arg0: i32) -> (i32, i32) {
    %c0_i32 = arith.constant 0 : i32
    %c0_i32_0 = arith.constant 0 : i32
    return %c0_i32, %arg0 : i32, i32
  }
}

</mosaic_0001>

<llo_original>
// kernel: gaussian_policy_forward.1
$region0: #{gaussian_policy_forward.1}
  #allocation0 [shape = 'u32[]', space=smem, size = 0x4, offset = 0x4, fixed_abs, tag = 'smem constant byte address 0x4 - core index']
  #allocation1 [shape = 'u32[144,128]{1,0:T(1,128)}', space=vmem, size = 0x12000, scoped, tag = 'internal scratch']
  %s0 = inlined_call_operand.vmem [shape: bf16[12,8], index: 0, kind: input, shape index: {}]
  %s1 = inlined_call_operand.vmem [shape: bf16[4,8], index: 1, kind: input, shape index: {}]
  %s2 = inlined_call_operand.vmem [shape: bf16[32,12], index: 2, kind: input, shape index: {}]
  %s3 = inlined_call_operand.vmem [shape: bf16[32,4], index: 3, kind: input, shape index: {}]
  %s4 = inlined_call_operand.vmem [shape: f32[32,1], index: 4, kind: input, shape index: {}]
  %s5 = inlined_call_operand.vmem [shape: bf16[32,32], index: 5, kind: input, shape index: {}]
  %s6 = inlined_call_operand.vmem [shape: f32[32,1], index: 6, kind: input, shape index: {}]
  %s7 = inlined_call_operand.vmem [shape: bf16[8,32], index: 7, kind: input, shape index: {}]
  %s8 = inlined_call_operand.vmem [shape: f32[8,1], index: 8, kind: input, shape index: {}]
  %s9 = inlined_call_operand.vmem [shape: f32[8,8], index: 9, kind: output, shape index: {}]
  %s10 = sld [smem:[#allocation0]]
  $region46: #{gaussian_policy_forward.1} parent=0
    _
  %s12 = ssub.s32 1, %s10
  %s13 = scalar_select 0, %s12, %s10
  // Predicated region
  $region2: #{gaussian_policy_forward.1} parent=0 // pred_check
    _
  $region3: #{gaussian_policy_forward.1} parent=0 // pred_check_branch
    %15 = sbr.rel (0) target = $region5
  $region4: #{gaussian_policy_forward.1} parent=0 // pred_region
    _
  $region5: #{gaussian_policy_forward.1} parent=0 // pred_fallthru
    _
  // Predicated region
  $region6: #{gaussian_policy_forward.1} parent=0 // pred_check
    _
  $region7: #{gaussian_policy_forward.1} parent=0 // pred_check_branch
    %17 = sbr.rel (0) target = $region9
  $region8: #{gaussian_policy_forward.1} parent=0 // pred_region
    _
  $region9: #{gaussian_policy_forward.1} parent=0 // pred_fallthru
    _
  // Predicated region
  $region10: #{gaussian_policy_forward.1} parent=0 // pred_check
    _
  $region11: #{gaussian_policy_forward.1} parent=0 // pred_check_branch
    %19 = sbr.rel (0) target = $region13
  $region12: #{gaussian_policy_forward.1} parent=0 // pred_region
    _
  $region13: #{gaussian_policy_forward.1} parent=0 // pred_fallthru
    _
  // Predicated region
  $region14: #{gaussian_policy_forward.1} parent=0 // pred_check
    _
  $region15: #{gaussian_policy_forward.1} parent=0 // pred_check_branch
    %21 = sbr.rel (0) target = $region17
  $region16: #{gaussian_policy_forward.1} parent=0 // pred_region
    _
  $region17: #{gaussian_policy_forward.1} parent=0 // pred_fallthru
    _
  // Predicated region
  $region18: #{gaussian_policy_forward.1} parent=0 // pred_check
    _
  $region19: #{gaussian_policy_forward.1} parent=0 // pred_check_branch
    %23 = sbr.rel (0) target = $region21
  $region20: #{gaussian_policy_forward.1} parent=0 // pred_region
    _
  $region21: #{gaussian_policy_forward.1} parent=0 // pred_fallthru
    _
  // Predicated region
  $region22: #{gaussian_policy_forward.1} parent=0 // pred_check
    _
  $region23: #{gaussian_policy_forward.1} parent=0 // pred_check_branch
    %25 = sbr.rel (0) target = $region25
  $region24: #{gaussian_policy_forward.1} parent=0 // pred_region
    _
  $region25: #{gaussian_policy_forward.1} parent=0 // pred_fallthru
    _
  // Predicated region
  $region26: #{gaussian_policy_forward.1} parent=0 // pred_check
    _
  $region27: #{gaussian_policy_forward.1} parent=0 // pred_check_branch
    %27 = sbr.rel (0) target = $region29
  $region28: #{gaussian_policy_forward.1} parent=0 // pred_region
    _
  $region29: #{gaussian_policy_forward.1} parent=0 // pred_fallthru
    _
  // Predicated region
  $region30: #{gaussian_policy_forward.1} parent=0 // pred_check
    _
  $region31: #{gaussian_policy_forward.1} parent=0 // pred_check_branch
    %29 = sbr.rel (0) target = $region33
  $region32: #{gaussian_policy_forward.1} parent=0 // pred_region
    _
  $region33: #{gaussian_policy_forward.1} parent=0 // pred_fallthru
    _
  // Predicated region
  $region34: #{gaussian_policy_forward.1} parent=0 // pred_check
    _
  $region35: #{gaussian_policy_forward.1} parent=0 // pred_check_branch
    %31 = sbr.rel (0) target = $region37
  $region36: #{gaussian_policy_forward.1} parent=0 // pred_region
    _
  $region37: #{gaussian_policy_forward.1} parent=0 // pred_fallthru
    _
  %v33 = vld [vmem:[%s2] sm:$0xf]
  %v34 = vld [vmem:[%s2 + $0x4] sm:$0xf]
  %v35 = vld [vmem:[%s2 + $0x8] sm:$0xf]
  %v36 = vld [vmem:[%s2 + $0xc] sm:$0xf]
  %v37 = vld [vmem:[%s0] sm:$0xf]
  %v38 = vld [vmem:[%s0 + $0x4] sm:$0x3]
  %v39 = vld [vmem:[%s3] sm:$0xf]
  %v40 = vld [vmem:[%s3 + $0x4] sm:$0xf]
  %v41 = vld [vmem:[%s3 + $0x8] sm:$0xf]
  %v42 = vld [vmem:[%s3 + $0xc] sm:$0xf]
  %v43 = vld [vmem:[%s1] sm:$0x3]
  %v48 = vunpack.c.l.b16 %v39
  %v49 = vunpack.c.l.b16 %v40
  %v50 = vunpack.c.l.b16 %v41
  %v51 = vunpack.c.l.b16 %v42
  %v52 = vpack.c.b16 %v49, %v48
  %v53 = vpack.c.b16 %v51, %v50
  %vm54 = vcmask 31744
  %v56 = vsel %vm54, %v52, 0
  %v59 = vsel %vm54, %v53, 0
  %vm61 = vcmask 1041408
  %v63 = vsel %vm61, %v43, 0
  %65 = vmatprep.subr.bf16.mxu0 0
  %66 = vmatpush1.bf16.msra.mxu0 %v63
  %67 = vmatprep.subr.bf16.mxu0 0
  %68 = vmatpush1.bf16.msra.mxu0 0
  %69 = vmatprep.subr.bf16.mxu0 0
  %70 = vmatpush1.bf16.msra.mxu0 0
  %71 = vmatprep.subr.bf16.mxu0 0
  %72 = vmatpush1.bf16.msra.mxu0 0
  %73 = vmatprep.subr.bf16.mxu0 0
  %74 = vmatpush1.bf16.msra.mxu0 0
  %75 = vmatprep.subr.bf16.mxu0 0
  %76 = vmatpush1.bf16.msra.mxu0 0
  %77 = vmatprep.subr.bf16.mxu0 0
  %78 = vmatpush1.bf16.msra.mxu0 0
  %79 = vmatprep.subr.bf16.mxu0 0
  %80 = vmatpush1.bf16.msra.mxu0 0
  %81 = vmatprep.subr.bf16.mxu0 0
  %82 = vmatpush1.bf16.msra.mxu0 0
  %83 = vmatprep.subr.bf16.mxu0 0
  %84 = vmatpush1.bf16.msra.mxu0 0
  %85 = vmatprep.subr.bf16.mxu0 0
  %86 = vmatpush1.bf16.msra.mxu0 0
  %87 = vmatprep.subr.bf16.mxu0 0
  %88 = vmatpush1.bf16.msra.mxu0 0
  %89 = vmatprep.subr.bf16.mxu0 0
  %90 = vmatpush1.bf16.msra.mxu0 0
  %91 = vmatprep.subr.bf16.mxu0 0
  %92 = vmatpush1.bf16.msra.mxu0 0
  %93 = vmatprep.subr.bf16.mxu0 0
  %94 = vmatpush1.bf16.msra.mxu0 0
  %95 = vmatprep.subr.bf16.mxu0 0
  %96 = vmatpush1.bf16.msra.mxu0 0
  %97 = vmatprep.mubr.bf16.mxu0 0
  %98 = vmatmul.mubr.bf16.gmra.mrb[0].mxu0 %v56
  %v99 = vpop.f32.mrb[0].mxu0
  %v100 = vadd.f32 0.0, %v99
  %v101 = vpop.f32.mrb[0].mxu0
  %v102 = vpop.f32.mrb[0].mxu0
  %v103 = vadd.f32 0.0, %v102
  %v104 = vpop.f32.mrb[0].mxu0
  %105 = vmatprep.mubr.bf16.mxu0 0
  %106 = vmatmul.mubr.bf16.gmra.mrb[0].mxu0 %v59
  %v107 = vpop.f32.mrb[0].mxu0
  %v108 = vadd.f32 0.0, %v107
  %v109 = vpop.f32.mrb[0].mxu0
  %v110 = vpop.f32.mrb[0].mxu0
  %v111 = vadd.f32 0.0, %v110
  %v112 = vpop.f32.mrb[0].mxu0
  %113 = vdwg.mxu0
  %v118 = vunpack.c.l.b16 %v33
  %v119 = vunpack.c.l.b16 %v34
  %v120 = vunpack.c.l.b16 %v35
  %v121 = vunpack.c.l.b16 %v36
  %v122 = vpack.c.b16 %v119, %v118
  %v123 = vpack.c.b16 %v121, %v120
  %v126 = vunpack.c.l.b16 %v37
  %v127 = vunpack.c.l.b16 %v38
  %v128 = vpack.c.b16 %v127, %v126
  %vm129 = vcmask 97280
  %v131 = vsel %vm129, %v122, 0
  %v134 = vsel %vm129, %v123, 0
  %vm136 = vcmask 1045504
  %v138 = vsel %vm136, %v128, 0
  %140 = vmatprep.subr.bf16.mxu0 0
  %141 = vmatpush1.bf16.msra.mxu0 %v138
  %142 = vmatprep.subr.bf16.mxu0 0
  %143 = vmatpush1.bf16.msra.mxu0 0
  %144 = vmatprep.subr.bf16.mxu0 0
  %145 = vmatpush1.bf16.msra.mxu0 0
  %146 = vmatprep.subr.bf16.mxu0 0
  %147 = vmatpush1.bf16.msra.mxu0 0
  %148 = vmatprep.subr.bf16.mxu0 0
  %149 = vmatpush1.bf16.msra.mxu0 0
  %150 = vmatprep.subr.bf16.mxu0 0
  %151 = vmatpush1.bf16.msra.mxu0 0
  %152 = vmatprep.subr.bf16.mxu0 0
  %153 = vmatpush1.bf16.msra.mxu0 0
  %154 = vmatprep.subr.bf16.mxu0 0
  %155 = vmatpush1.bf16.msra.mxu0 0
  %156 = vmatprep.subr.bf16.mxu0 0
  %157 = vmatpush1.bf16.msra.mxu0 0
  %158 = vmatprep.subr.bf16.mxu0 0
  %159 = vmatpush1.bf16.msra.mxu0 0
  %160 = vmatprep.subr.bf16.mxu0 0
  %161 = vmatpush1.bf16.msra.mxu0 0
  %162 = vmatprep.subr.bf16.mxu0 0
  %163 = vmatpush1.bf16.msra.mxu0 0
  %164 = vmatprep.subr.bf16.mxu0 0
  %165 = vmatpush1.bf16.msra.mxu0 0
  %166 = vmatprep.subr.bf16.mxu0 0
  %167 = vmatpush1.bf16.msra.mxu0 0
  %168 = vmatprep.subr.bf16.mxu0 0
  %169 = vmatpush1.bf16.msra.mxu0 0
  %170 = vmatprep.subr.bf16.mxu0 0
  %171 = vmatpush1.bf16.msra.mxu0 0
  %172 = vmatprep.mubr.bf16.mxu0 0
  %173 = vmatmul.mubr.bf16.gmra.mrb[0].mxu0 %v131
  %v174 = vpop.f32.mrb[0].mxu0
  %v175 = vadd.f32 %v100, %v174
  %v176 = vpop.f32.mrb[0].mxu0
  %v177 = vpop.f32.mrb[0].mxu0
  %v178 = vadd.f32 %v103, %v177
  %v179 = vpop.f32.mrb[0].mxu0
  %180 = vmatprep.mubr.bf16.mxu0 0
  %181 = vmatmul.mubr.bf16.gmra.mrb[0].mxu0 %v134
  %v182 = vpop.f32.mrb[0].mxu0
  %v183 = vadd.f32 %v108, %v182
  %v184 = vpop.f32.mrb[0].mxu0
  %v185 = vpop.f32.mrb[0].mxu0
  %v186 = vadd.f32 %v111, %v185
  %v187 = vpop.f32.mrb[0].mxu0
  %188 = vdwg.mxu0
  %v189 = vld [vmem:[%s4] sm:$0xff]
  %v190 = vld [vmem:[%s4 + $0x8] sm:$0xff]
  %v191 = vld [vmem:[%s4 + $0x10] sm:$0xff]
  %v192 = vld [vmem:[%s4 + $0x18] sm:$0xff]
  %194 = vset.pattern.permute.xlu0 0
  %195 = vperm.xlu0 %194, %v189
  %v196 = vpop.permute.xlu0 %195
  %199 = vset.pattern.permute.xlu0 0
  %200 = vperm.xlu0 %199, %v190
  %v201 = vpop.permute.xlu0 %200
  %204 = vset.pattern.permute.xlu0 0
  %205 = vperm.xlu0 %204, %v191
  %v206 = vpop.permute.xlu0 %205
  %209 = vset.pattern.permute.xlu0 0
  %210 = vperm.xlu0 %209, %v192
  %v211 = vpop.permute.xlu0 %210
  %v213 = vadd.f32 %v175, %v196
  %v214 = vadd.f32 %v178, %v201
  %v215 = vadd.f32 %v183, %v206
  %v216 = vadd.f32 %v186, %v211
  %v217 = vmax.f32 %v213, 0.0
  %v218 = vmax.f32 %v214, 0.0
  %v219 = vmax.f32 %v215, 0.0
  %v220 = vmax.f32 %v216, 0.0
  %v221 = vld [vmem:[%s5] sm:$0xf]
  %v222 = vld [vmem:[%s5 + $0x4] sm:$0xf]
  %v223 = vld [vmem:[%s5 + $0x8] sm:$0xf]
  %v224 = vld [vmem:[%s5 + $0xc] sm:$0xf]
  %v225 = vpack.c.bf16 %v218, %v217
  %v226 = vpack.c.bf16 %v220, %v219
  %v227 = vld [vmem:[%s6] sm:$0xff]
  %v228 = vld [vmem:[%s6 + $0x8] sm:$0xff]
  %v229 = vld [vmem:[%s6 + $0x10] sm:$0xff]
  %v230 = vld [vmem:[%s6 + $0x18] sm:$0xff]
  %232 = vset.pattern.permute.xlu0 0
  %233 = vperm.xlu0 %232, %v227
  %v234 = vpop.permute.xlu0 %233
  %237 = vset.pattern.permute.xlu0 0
  %238 = vperm.xlu0 %237, %v228
  %v239 = vpop.permute.xlu0 %238
  %242 = vset.pattern.permute.xlu0 0
  %243 = vperm.xlu0 %242, %v229
  %v244 = vpop.permute.xlu0 %243
  %247 = vset.pattern.permute.xlu0 0
  %248 = vperm.xlu0 %247, %v230
  %v249 = vpop.permute.xlu0 %248
  %v255 = vunpack.c.l.b16 %v221
  %v256 = vunpack.c.l.b16 %v222
  %v257 = vunpack.c.l.b16 %v223
  %v258 = vunpack.c.l.b16 %v224
  %v259 = vpack.c.b16 %v256, %v255
  %v260 = vpack.c.b16 %v258, %v257
  %vm261 = vcmask 261120
  %v263 = vsel %vm261, %v259, 0
  %v266 = vsel %vm261, %v260, 0
  %268 = vmatprep.subr.bf16.mxu0 0
  %269 = vmatpush1.bf16.msra.mxu0 %v225
  %270 = vmatprep.subr.bf16.mxu0 0
  %271 = vmatpush1.bf16.msra.mxu0 %v226
  %272 = vmatprep.subr.bf16.mxu0 0
  %273 = vmatpush1.bf16.msra.mxu0 0
  %274 = vmatprep.subr.bf16.mxu0 0
  %275 = vmatpush1.bf16.msra.mxu0 0
  %276 = vmatprep.subr.bf16.mxu0 0
  %277 = vmatpush1.bf16.msra.mxu0 0
  %278 = vmatprep.subr.bf16.mxu0 0
  %279 = vmatpush1.bf16.msra.mxu0 0
  %280 = vmatprep.subr.bf16.mxu0 0
  %281 = vmatpush1.bf16.msra.mxu0 0
  %282 = vmatprep.subr.bf16.mxu0 0
  %283 = vmatpush1.bf16.msra.mxu0 0
  %284 = vmatprep.subr.bf16.mxu0 0
  %285 = vmatpush1.bf16.msra.mxu0 0
  %286 = vmatprep.subr.bf16.mxu0 0
  %287 = vmatpush1.bf16.msra.mxu0 0
  %288 = vmatprep.subr.bf16.mxu0 0
  %289 = vmatpush1.bf16.msra.mxu0 0
  %290 = vmatprep.subr.bf16.mxu0 0
  %291 = vmatpush1.bf16.msra.mxu0 0
  %292 = vmatprep.subr.bf16.mxu0 0
  %293 = vmatpush1.bf16.msra.mxu0 0
  %294 = vmatprep.subr.bf16.mxu0 0
  %295 = vmatpush1.bf16.msra.mxu0 0
  %296 = vmatprep.subr.bf16.mxu0 0
  %297 = vmatpush1.bf16.msra.mxu0 0
  %298 = vmatprep.subr.bf16.mxu0 0
  %299 = vmatpush1.bf16.msra.mxu0 0
  %300 = vmatprep.mubr.bf16.mxu0 0
  %301 = vmatmul.mubr.bf16.gmra.mrb[0].mxu0 %v263
  %v302 = vpop.f32.mrb[0].mxu0
  %v303 = vadd.f32 %v234, %v302
  %v304 = vpop.f32.mrb[0].mxu0
  %v305 = vpop.f32.mrb[0].mxu0
  %v306 = vadd.f32 %v239, %v305
  %v307 = vpop.f32.mrb[0].mxu0
  %308 = vmatprep.mubr.bf16.mxu0 0
  %309 = vmatmul.mubr.bf16.gmra.mrb[0].mxu0 %v266
  %v310 = vpop.f32.mrb[0].mxu0
  %v311 = vadd.f32 %v244, %v310
  %v312 = vpop.f32.mrb[0].mxu0
  %v313 = vpop.f32.mrb[0].mxu0
  %v314 = vadd.f32 %v249, %v313
  %v315 = vpop.f32.mrb[0].mxu0
  %316 = vdwg.mxu0
  %v317 = vmax.f32 %v303, 0.0
  %v318 = vmax.f32 %v306, 0.0
  %v319 = vmax.f32 %v311, 0.0
  %v320 = vmax.f32 %v314, 0.0
  %v321 = vld [vmem:[%s7] sm:$0xf]
  %v322 = vpack.c.bf16 %v318, %v317
  %v323 = vpack.c.bf16 %v320, %v319
  %v324 = vld [vmem:[%s8] sm:$0xff]
  %326 = vset.pattern.permute.xlu0 0
  %327 = vperm.xlu0 %326, %v324
  %v328 = vpop.permute.xlu0 %327
  %v331 = vsel %vm261, %v321, 0
  %333 = vmatprep.subr.bf16.mxu0 0
  %334 = vmatpush1.bf16.msra.mxu0 %v322
  %335 = vmatprep.subr.bf16.mxu0 0
  %336 = vmatpush1.bf16.msra.mxu0 %v323
  %337 = vmatprep.subr.bf16.mxu0 0
  %338 = vmatpush1.bf16.msra.mxu0 0
  %339 = vmatprep.subr.bf16.mxu0 0
  %340 = vmatpush1.bf16.msra.mxu0 0
  %341 = vmatprep.subr.bf16.mxu0 0
  %342 = vmatpush1.bf16.msra.mxu0 0
  %343 = vmatprep.subr.bf16.mxu0 0
  %344 = vmatpush1.bf16.msra.mxu0 0
  %345 = vmatprep.subr.bf16.mxu0 0
  %346 = vmatpush1.bf16.msra.mxu0 0
  %347 = vmatprep.subr.bf16.mxu0 0
  %348 = vmatpush1.bf16.msra.mxu0 0
  %349 = vmatprep.subr.bf16.mxu0 0
  %350 = vmatpush1.bf16.msra.mxu0 0
  %351 = vmatprep.subr.bf16.mxu0 0
  %352 = vmatpush1.bf16.msra.mxu0 0
  %353 = vmatprep.subr.bf16.mxu0 0
  %354 = vmatpush1.bf16.msra.mxu0 0
  %355 = vmatprep.subr.bf16.mxu0 0
  %356 = vmatpush1.bf16.msra.mxu0 0
  %357 = vmatprep.subr.bf16.mxu0 0
  %358 = vmatpush1.bf16.msra.mxu0 0
  %359 = vmatprep.subr.bf16.mxu0 0
  %360 = vmatpush1.bf16.msra.mxu0 0
  %361 = vmatprep.subr.bf16.mxu0 0
  %362 = vmatpush1.bf16.msra.mxu0 0
  %363 = vmatprep.subr.bf16.mxu0 0
  %364 = vmatpush1.bf16.msra.mxu0 0
  %365 = vmatprep.mubr.bf16.mxu0 0
  %366 = vmatmul.mubr.bf16.gmra.mrb[0].mxu0 %v331
  %v367 = vpop.f32.mrb[0].mxu0
  %v368 = vadd.f32 %v328, %v367
  %v369 = vpop.f32.mrb[0].mxu0
  %v370 = vpop.f32.mrb[0].mxu0
  %v371 = vpop.f32.mrb[0].mxu0
  %372 = vdwg.mxu0
  %v373 = vlaneseq
  %v374 = vshrl.u32 %v373, 7
  %vm375 = vcmp.ge.s32.totalorder %v374, 4
  %v376 = vmax.f32 %v368, -20.0
  %v377 = vmin.f32 %v376, 2.0
  %v378 = vsel %vm375, %v377, %v368
  %vm379 = vcmask 64512
  %380 = vst.msk [vmem:[%s9] sm:$0xff] %vm379, %v378
  // Predicated region
  $region38: #{gaussian_policy_forward.1} parent=0 // pred_check
    _
  $region39: #{gaussian_policy_forward.1} parent=0 // pred_check_branch
    %382 = sbr.rel (0) target = $region41
  $region40: #{gaussian_policy_forward.1} parent=0 // pred_region
    _
  $region41: #{gaussian_policy_forward.1} parent=0 // pred_fallthru
    _
  // Predicated region
  $region42: #{gaussian_policy_forward.1} parent=0 // pred_check
    _
  $region43: #{gaussian_policy_forward.1} parent=0 // pred_check_branch
    %384 = sbr.rel (0) target = $region45
  $region44: #{gaussian_policy_forward.1} parent=0 // pred_region
    _
  $region45: #{gaussian_policy_forward.1} parent=0 // pred_fallthru
    _

</llo_original>
